<compile_context>
chip_gen: v7x
topology: tpu7x:2x2x1
jax: 0.10.0
libtpu: 0.0.40
codegen_flags: <defaults>
</compile_context>

<pallas_src>
import jax
import jax.numpy as jnp
from jax.experimental import pallas as pl
from jax.experimental.pallas import tpu as pltpu


def _round_up(x, m):
    return ((x + m - 1) // m) * m


def _vmem_info():
    """Returns (physical VMEM bytes, bytes the resident table may use)."""
    try:
        cap = int(pltpu.get_tpu_info().vmem_capacity_bytes)
    except Exception:
        cap = 64 << 20  # conservative default: v7x per-TensorCore VMEM
    # Leave half of VMEM (minus slack) for output double-buffering, ids and
    # compiler scratch: ~16 MiB budget on v7x, ~48 MiB on v5e/v6e.
    budget = max(cap // 2 - (16 << 20), 8 << 20)
    return cap, budget


# ----------------------------------------------------------------------------
# Fast path: table resident in VMEM, T tokens gathered per grid step.
# ----------------------------------------------------------------------------
def _make_resident_gather_kernel(tokens_per_step):
    def kernel(ids_ref, w_ref, o_ref):
        # ids_ref: (Npad,) int32 in SMEM (scalar prefetch).
        # w_ref:   (V, D) full embedding table, resident in VMEM.
        # o_ref:   (T, D) output tile for tokens [i*T, (i+1)*T).
        base = pl.program_id(0) * tokens_per_step
        for t in range(tokens_per_step):  # static unroll; T <= 64
            row = ids_ref[base + t]
            o_ref[pl.ds(t, 1), :] = w_ref[pl.ds(row, 1), :]
    return kernel


def _embed_resident_table(ids, weight, n_tokens):
    V, D = weight.shape
    cap, _ = _vmem_info()

    # Output tile: multiple of 8 sublanes, amortizes per-grid-step overhead.
    T = min(_round_up(n_tokens, 8), 64)
    n_pad = _round_up(n_tokens, T)
    if n_pad != n_tokens:
        ids = jnp.pad(ids, (0, n_pad - n_tokens))  # padded ids are valid (0)

    itemsize = jnp.dtype(weight.dtype).itemsize
    table_bytes = V * D * itemsize
    out_block_bytes = T * D * itemsize
    vmem_limit = int(min(cap, max(16 << 20,
                                  table_bytes + 4 * out_block_bytes + (8 << 20))))

    out = pl.pallas_call(
        _make_resident_gather_kernel(T),
        out_shape=jax.ShapeDtypeStruct((n_pad, D), weight.dtype),
        grid_spec=pltpu.PrefetchScalarGridSpec(
            num_scalar_prefetch=1,          # ids -> SMEM, visible in the body
            grid=(n_pad // T,),
            in_specs=[
                # Constant block index -> whole table DMA'd once, stays resident.
                pl.BlockSpec((V, D), lambda i, ids: (0, 0)),
            ],
            out_specs=pl.BlockSpec((T, D), lambda i, ids: (i, 0)),
        ),
        compiler_params=pltpu.CompilerParams(
            # TODO(synk): on v7x, shard the token axis across both TensorCores
            # (CORE_PARALLEL / core_map) for large N; irrelevant at this size.
            dimension_semantics=("arbitrary",),
            vmem_limit_bytes=vmem_limit,
        ),
    )(ids, weight)
    return out[:n_tokens]


# ----------------------------------------------------------------------------
# Fallback for tables too large for VMEM residency: per-row BlockSpec gather
# driven by scalar-prefetched ids, with a deeper pipeline to hide row latency.
# ----------------------------------------------------------------------------
def _row_gather_kernel(ids_ref, w_row_ref, o_ref):
    # Pallas already DMA'd exactly the one table row this step needs.
    del ids_ref  # consumed by the index_maps only
    o_ref[...] = w_row_ref[...]


def _embed_row_gather(ids, weight, n_tokens):
    V, D = weight.shape
    # For a real vocab D is normally already a multiple of 128, making this
    # pad a no-op; in a full model the padded table would be built once at
    # parameter init rather than per forward call.
    Dp = _round_up(D, 128)
    w = weight if Dp == D else jnp.pad(weight, ((0, 0), (0, Dp - D)))
    # TODO(synk): scalar-prefetched ids live in SMEM; for very large B*L they
    # should be chunked per grid step instead of prefetched wholesale.
    out = pl.pallas_call(
        _row_gather_kernel,
        out_shape=jax.ShapeDtypeStruct((n_tokens, Dp), weight.dtype),
        grid_spec=pltpu.PrefetchScalarGridSpec(
            num_scalar_prefetch=1,
            grid=(n_tokens,),
            in_specs=[
                # DMA only the needed row; 4-deep pipeline keeps several row
                # fetches in flight since the body is a bare copy.
                pl.BlockSpec((1, Dp), lambda i, ids: (ids[i], 0),
                             pipeline_mode=pl.Buffered(4)),
            ],
            out_specs=pl.BlockSpec((1, Dp), lambda i, ids: (i, 0)),
        ),
        compiler_params=pltpu.CompilerParams(
            dimension_semantics=("arbitrary",),
        ),
    )(ids, w)
    return out[:, :D] if Dp != D else out


# ----------------------------------------------------------------------------
# Public forward: PatchEmbed.forward(seq) == nn.Embedding(V, D)(seq)
# ----------------------------------------------------------------------------
def patch_embed_forward(seq, weight):
    """seq: (B, L) int token ids, weight: (V, D) embedding table -> (B, L, D)."""
    B, L = seq.shape
    V, D = weight.shape
    N = B * L

    # PyTorch nn.Embedding raises on out-of-range ids; clamp instead so the
    # gather can never address out of bounds.
    # TODO(synk): no in-kernel equivalent of PyTorch's index-out-of-range error.
    ids = jnp.clip(seq.reshape(N).astype(jnp.int32), 0, V - 1)

    _, table_budget = _vmem_info()
    table_bytes = V * D * jnp.dtype(weight.dtype).itemsize
    if table_bytes <= table_budget:
        out = _embed_resident_table(ids, weight, N)
    else:
        out = _embed_row_gather(ids, weight, N)
    return out.reshape(B, L, D)


if __name__ == "__main__":
    key = jax.random.PRNGKey(0)
    k_w, k_s = jax.random.split(key)

    V, D = 40, 32        # pre_weight.size(0), pre_weight.size(1)
    B, L = 2, 8          # batch, sequence length

    # nn.Embedding default init: N(0, 1) — deterministic synthetic weights.
    weight = jax.random.normal(k_w, (V, D), dtype=jnp.float32)
    seq = jax.random.randint(k_s, (B, L), 0, V, dtype=jnp.int32)

    out = patch_embed_forward(seq, weight)
    out = jax.block_until_ready(out)

    # Reference check (plain JAX gather == PyTorch nn.Embedding forward).
    ref = jnp.take(weight, seq, axis=0)
    assert out.shape == (B, L, D)
    assert jnp.array_equal(out, ref), "mismatch vs reference embedding lookup"

    print("KERNEL_OK")
</pallas_src>

<mosaic_0001>
module attributes {stable_mosaic.version = 11 : i64} {
  func.func @kernel(%arg0: i32, %arg1: memref<16xi32, #tpu.memory_space<smem>>, %arg2: memref<40x32xf32, #tpu.memory_space<vmem>>, %arg3: memref<16x32xf32, #tpu.memory_space<vmem>>) attributes {dimension_semantics = [#tpu.dimension_semantics<arbitrary>], iteration_bounds = array<i64: 1>, scalar_prefetch = 1 : i64, scratch_operands = 0 : i64, tpu.core_type = #tpu.core_type<tc>, window_params = [{pipeline_mode = #tpu.pipeline_mode<synchronous>, transform_indices = @transform_0, window_bounds = array<i64: 40, 32>}, {transform_indices = @transform_1, window_bounds = array<i64: 16, 32>}]} {
    %c16_i32 = arith.constant 16 : i32
    %0 = arith.muli %arg0, %c16_i32 : i32
    %c0_i32 = arith.constant 0 : i32
    %1 = arith.addi %0, %c0_i32 : i32
    %2 = arith.index_cast %1 : i32 to index
    %3 = memref.load %arg1[%2] : memref<16xi32, #tpu.memory_space<smem>>
    %4 = arith.index_cast %3 : i32 to index
    %c0 = arith.constant 0 : index
    %5 = vector.load %arg2[%4, %c0] : memref<40x32xf32, #tpu.memory_space<vmem>>, vector<1x32xf32>
    %c0_0 = arith.constant 0 : index
    %c0_1 = arith.constant 0 : index
    %6 = vector.load %arg3[%c0_0, %c0_1] : memref<16x32xf32, #tpu.memory_space<vmem>>, vector<1x32xf32>
    tpu.vector_store %arg3[%c0_0, %c0_1], %5 {strides = array<i32>} : memref<16x32xf32, #tpu.memory_space<vmem>>, vector<1x32xf32>,
    %c1_i32 = arith.constant 1 : i32
    %7 = arith.addi %0, %c1_i32 : i32
    %8 = arith.index_cast %7 : i32 to index
    %9 = memref.load %arg1[%8] : memref<16xi32, #tpu.memory_space<smem>>
    %10 = arith.index_cast %9 : i32 to index
    %c0_2 = arith.constant 0 : index
    %11 = vector.load %arg2[%10, %c0_2] : memref<40x32xf32, #tpu.memory_space<vmem>>, vector<1x32xf32>
    %c1 = arith.constant 1 : index
    %c0_3 = arith.constant 0 : index
    %12 = vector.load %arg3[%c1, %c0_3] : memref<16x32xf32, #tpu.memory_space<vmem>>, vector<1x32xf32>
    tpu.vector_store %arg3[%c1, %c0_3], %11 {strides = array<i32>} : memref<16x32xf32, #tpu.memory_space<vmem>>, vector<1x32xf32>,
    %c2_i32 = arith.constant 2 : i32
    %13 = arith.addi %0, %c2_i32 : i32
    %14 = arith.index_cast %13 : i32 to index
    %15 = memref.load %arg1[%14] : memref<16xi32, #tpu.memory_space<smem>>
    %16 = arith.index_cast %15 : i32 to index
    %c0_4 = arith.constant 0 : index
    %17 = vector.load %arg2[%16, %c0_4] : memref<40x32xf32, #tpu.memory_space<vmem>>, vector<1x32xf32>
    %c2 = arith.constant 2 : index
    %c0_5 = arith.constant 0 : index
    %18 = vector.load %arg3[%c2, %c0_5] : memref<16x32xf32, #tpu.memory_space<vmem>>, vector<1x32xf32>
    tpu.vector_store %arg3[%c2, %c0_5], %17 {strides = array<i32>} : memref<16x32xf32, #tpu.memory_space<vmem>>, vector<1x32xf32>,
    %c3_i32 = arith.constant 3 : i32
    %19 = arith.addi %0, %c3_i32 : i32
    %20 = arith.index_cast %19 : i32 to index
    %21 = memref.load %arg1[%20] : memref<16xi32, #tpu.memory_space<smem>>
    %22 = arith.index_cast %21 : i32 to index
    %c0_6 = arith.constant 0 : index
    %23 = vector.load %arg2[%22, %c0_6] : memref<40x32xf32, #tpu.memory_space<vmem>>, vector<1x32xf32>
    %c3 = arith.constant 3 : index
    %c0_7 = arith.constant 0 : index
    %24 = vector.load %arg3[%c3, %c0_7] : memref<16x32xf32, #tpu.memory_space<vmem>>, vector<1x32xf32>
    tpu.vector_store %arg3[%c3, %c0_7], %23 {strides = array<i32>} : memref<16x32xf32, #tpu.memory_space<vmem>>, vector<1x32xf32>,
    %c4_i32 = arith.constant 4 : i32
    %25 = arith.addi %0, %c4_i32 : i32
    %26 = arith.index_cast %25 : i32 to index
    %27 = memref.load %arg1[%26] : memref<16xi32, #tpu.memory_space<smem>>
    %28 = arith.index_cast %27 : i32 to index
    %c0_8 = arith.constant 0 : index
    %29 = vector.load %arg2[%28, %c0_8] : memref<40x32xf32, #tpu.memory_space<vmem>>, vector<1x32xf32>
    %c4 = arith.constant 4 : index
    %c0_9 = arith.constant 0 : index
    %30 = vector.load %arg3[%c4, %c0_9] : memref<16x32xf32, #tpu.memory_space<vmem>>, vector<1x32xf32>
    tpu.vector_store %arg3[%c4, %c0_9], %29 {strides = array<i32>} : memref<16x32xf32, #tpu.memory_space<vmem>>, vector<1x32xf32>,
    %c5_i32 = arith.constant 5 : i32
    %31 = arith.addi %0, %c5_i32 : i32
    %32 = arith.index_cast %31 : i32 to index
    %33 = memref.load %arg1[%32] : memref<16xi32, #tpu.memory_space<smem>>
    %34 = arith.index_cast %33 : i32 to index
    %c0_10 = arith.constant 0 : index
    %35 = vector.load %arg2[%34, %c0_10] : memref<40x32xf32, #tpu.memory_space<vmem>>, vector<1x32xf32>
    %c5 = arith.constant 5 : index
    %c0_11 = arith.constant 0 : index
    %36 = vector.load %arg3[%c5, %c0_11] : memref<16x32xf32, #tpu.memory_space<vmem>>, vector<1x32xf32>
    tpu.vector_store %arg3[%c5, %c0_11], %35 {strides = array<i32>} : memref<16x32xf32, #tpu.memory_space<vmem>>, vector<1x32xf32>,
    %c6_i32 = arith.constant 6 : i32
    %37 = arith.addi %0, %c6_i32 : i32
    %38 = arith.index_cast %37 : i32 to index
    %39 = memref.load %arg1[%38] : memref<16xi32, #tpu.memory_space<smem>>
    %40 = arith.index_cast %39 : i32 to index
    %c0_12 = arith.constant 0 : index
    %41 = vector.load %arg2[%40, %c0_12] : memref<40x32xf32, #tpu.memory_space<vmem>>, vector<1x32xf32>
    %c6 = arith.constant 6 : index
    %c0_13 = arith.constant 0 : index
    %42 = vector.load %arg3[%c6, %c0_13] : memref<16x32xf32, #tpu.memory_space<vmem>>, vector<1x32xf32>
    tpu.vector_store %arg3[%c6, %c0_13], %41 {strides = array<i32>} : memref<16x32xf32, #tpu.memory_space<vmem>>, vector<1x32xf32>,
    %c7_i32 = arith.constant 7 : i32
    %43 = arith.addi %0, %c7_i32 : i32
    %44 = arith.index_cast %43 : i32 to index
    %45 = memref.load %arg1[%44] : memref<16xi32, #tpu.memory_space<smem>>
    %46 = arith.index_cast %45 : i32 to index
    %c0_14 = arith.constant 0 : index
    %47 = vector.load %arg2[%46, %c0_14] : memref<40x32xf32, #tpu.memory_space<vmem>>, vector<1x32xf32>
    %c7 = arith.constant 7 : index
    %c0_15 = arith.constant 0 : index
    %48 = vector.load %arg3[%c7, %c0_15] : memref<16x32xf32, #tpu.memory_space<vmem>>, vector<1x32xf32>
    tpu.vector_store %arg3[%c7, %c0_15], %47 {strides = array<i32>} : memref<16x32xf32, #tpu.memory_space<vmem>>, vector<1x32xf32>,
    %c8_i32 = arith.constant 8 : i32
    %49 = arith.addi %0, %c8_i32 : i32
    %50 = arith.index_cast %49 : i32 to index
    %51 = memref.load %arg1[%50] : memref<16xi32, #tpu.memory_space<smem>>
    %52 = arith.index_cast %51 : i32 to index
    %c0_16 = arith.constant 0 : index
    %53 = vector.load %arg2[%52, %c0_16] : memref<40x32xf32, #tpu.memory_space<vmem>>, vector<1x32xf32>
    %c8 = arith.constant 8 : index
    %c0_17 = arith.constant 0 : index
    %54 = vector.load %arg3[%c8, %c0_17] : memref<16x32xf32, #tpu.memory_space<vmem>>, vector<1x32xf32>
    tpu.vector_store %arg3[%c8, %c0_17], %53 {strides = array<i32>} : memref<16x32xf32, #tpu.memory_space<vmem>>, vector<1x32xf32>,
    %c9_i32 = arith.constant 9 : i32
    %55 = arith.addi %0, %c9_i32 : i32
    %56 = arith.index_cast %55 : i32 to index
    %57 = memref.load %arg1[%56] : memref<16xi32, #tpu.memory_space<smem>>
    %58 = arith.index_cast %57 : i32 to index
    %c0_18 = arith.constant 0 : index
    %59 = vector.load %arg2[%58, %c0_18] : memref<40x32xf32, #tpu.memory_space<vmem>>, vector<1x32xf32>
    %c9 = arith.constant 9 : index
    %c0_19 = arith.constant 0 : index
    %60 = vector.load %arg3[%c9, %c0_19] : memref<16x32xf32, #tpu.memory_space<vmem>>, vector<1x32xf32>
    tpu.vector_store %arg3[%c9, %c0_19], %59 {strides = array<i32>} : memref<16x32xf32, #tpu.memory_space<vmem>>, vector<1x32xf32>,
    %c10_i32 = arith.constant 10 : i32
    %61 = arith.addi %0, %c10_i32 : i32
    %62 = arith.index_cast %61 : i32 to index
    %63 = memref.load %arg1[%62] : memref<16xi32, #tpu.memory_space<smem>>
    %64 = arith.index_cast %63 : i32 to index
    %c0_20 = arith.constant 0 : index
    %65 = vector.load %arg2[%64, %c0_20] : memref<40x32xf32, #tpu.memory_space<vmem>>, vector<1x32xf32>
    %c10 = arith.constant 10 : index
    %c0_21 = arith.constant 0 : index
    %66 = vector.load %arg3[%c10, %c0_21] : memref<16x32xf32, #tpu.memory_space<vmem>>, vector<1x32xf32>
    tpu.vector_store %arg3[%c10, %c0_21], %65 {strides = array<i32>} : memref<16x32xf32, #tpu.memory_space<vmem>>, vector<1x32xf32>,
    %c11_i32 = arith.constant 11 : i32
    %67 = arith.addi %0, %c11_i32 : i32
    %68 = arith.index_cast %67 : i32 to index
    %69 = memref.load %arg1[%68] : memref<16xi32, #tpu.memory_space<smem>>
    %70 = arith.index_cast %69 : i32 to index
    %c0_22 = arith.constant 0 : index
    %71 = vector.load %arg2[%70, %c0_22] : memref<40x32xf32, #tpu.memory_space<vmem>>, vector<1x32xf32>
    %c11 = arith.constant 11 : index
    %c0_23 = arith.constant 0 : index
    %72 = vector.load %arg3[%c11, %c0_23] : memref<16x32xf32, #tpu.memory_space<vmem>>, vector<1x32xf32>
    tpu.vector_store %arg3[%c11, %c0_23], %71 {strides = array<i32>} : memref<16x32xf32, #tpu.memory_space<vmem>>, vector<1x32xf32>,
    %c12_i32 = arith.constant 12 : i32
    %73 = arith.addi %0, %c12_i32 : i32
    %74 = arith.index_cast %73 : i32 to index
    %75 = memref.load %arg1[%74] : memref<16xi32, #tpu.memory_space<smem>>
    %76 = arith.index_cast %75 : i32 to index
    %c0_24 = arith.constant 0 : index
    %77 = vector.load %arg2[%76, %c0_24] : memref<40x32xf32, #tpu.memory_space<vmem>>, vector<1x32xf32>
    %c12 = arith.constant 12 : index
    %c0_25 = arith.constant 0 : index
    %78 = vector.load %arg3[%c12, %c0_25] : memref<16x32xf32, #tpu.memory_space<vmem>>, vector<1x32xf32>
    tpu.vector_store %arg3[%c12, %c0_25], %77 {strides = array<i32>} : memref<16x32xf32, #tpu.memory_space<vmem>>, vector<1x32xf32>,
    %c13_i32 = arith.constant 13 : i32
    %79 = arith.addi %0, %c13_i32 : i32
    %80 = arith.index_cast %79 : i32 to index
    %81 = memref.load %arg1[%80] : memref<16xi32, #tpu.memory_space<smem>>
    %82 = arith.index_cast %81 : i32 to index
    %c0_26 = arith.constant 0 : index
    %83 = vector.load %arg2[%82, %c0_26] : memref<40x32xf32, #tpu.memory_space<vmem>>, vector<1x32xf32>
    %c13 = arith.constant 13 : index
    %c0_27 = arith.constant 0 : index
    %84 = vector.load %arg3[%c13, %c0_27] : memref<16x32xf32, #tpu.memory_space<vmem>>, vector<1x32xf32>
    tpu.vector_store %arg3[%c13, %c0_27], %83 {strides = array<i32>} : memref<16x32xf32, #tpu.memory_space<vmem>>, vector<1x32xf32>,
    %c14_i32 = arith.constant 14 : i32
    %85 = arith.addi %0, %c14_i32 : i32
    %86 = arith.index_cast %85 : i32 to index
    %87 = memref.load %arg1[%86] : memref<16xi32, #tpu.memory_space<smem>>
    %88 = arith.index_cast %87 : i32 to index
    %c0_28 = arith.constant 0 : index
    %89 = vector.load %arg2[%88, %c0_28] : memref<40x32xf32, #tpu.memory_space<vmem>>, vector<1x32xf32>
    %c14 = arith.constant 14 : index
    %c0_29 = arith.constant 0 : index
    %90 = vector.load %arg3[%c14, %c0_29] : memref<16x32xf32, #tpu.memory_space<vmem>>, vector<1x32xf32>
    tpu.vector_store %arg3[%c14, %c0_29], %89 {strides = array<i32>} : memref<16x32xf32, #tpu.memory_space<vmem>>, vector<1x32xf32>,
    %c15_i32 = arith.constant 15 : i32
    %91 = arith.addi %0, %c15_i32 : i32
    %92 = arith.index_cast %91 : i32 to index
    %93 = memref.load %arg1[%92] : memref<16xi32, #tpu.memory_space<smem>>
    %94 = arith.index_cast %93 : i32 to index
    %c0_30 = arith.constant 0 : index
    %95 = vector.load %arg2[%94, %c0_30] : memref<40x32xf32, #tpu.memory_space<vmem>>, vector<1x32xf32>
    %c15 = arith.constant 15 : index
    %c0_31 = arith.constant 0 : index
    %96 = vector.load %arg3[%c15, %c0_31] : memref<16x32xf32, #tpu.memory_space<vmem>>, vector<1x32xf32>
    tpu.vector_store %arg3[%c15, %c0_31], %95 {strides = array<i32>} : memref<16x32xf32, #tpu.memory_space<vmem>>, vector<1x32xf32>,
    return
  }
  func.func @transform_0(%arg0: i32, %arg1: memref<16xi32, #tpu.memory_space<smem>>) -> (i32, i32) {
    %c0_i32 = arith.constant 0 : i32
    %c0_i32_0 = arith.constant 0 : i32
    %c0_i32_1 = arith.constant 0 : i32
    return %c0_i32, %c0_i32_0 : i32, i32
  }
  func.func @transform_1(%arg0: i32, %arg1: memref<16xi32, #tpu.memory_space<smem>>) -> (i32, i32) {
    %c0_i32 = arith.constant 0 : i32
    %c0_i32_0 = arith.constant 0 : i32
    return %arg0, %c0_i32 : i32, i32
  }
}

</mosaic_0001>

<llo_original>
// kernel: tpu_custom_call.1
$region0: #{tpu_custom_call.1}
  #allocation0 [shape = 'u32[]', space=smem, size = 0x4, offset = 0x4, fixed_abs, tag = 'smem constant byte address 0x4 - core index']
  #allocation1 [shape = 'u32[144,128]{1,0:T(1,128)}', space=vmem, size = 0x12000, scoped, tag = 'internal scratch']
  #allocation2 [shape = 's32[1]{0}', space=sflag, size = 0x4, scoped, tag = 'scoped memory for tpu_custom_call.1']
  #allocation3 [shape = 'u8[512]{0}', space=smem, size = 0x200, scoped, tag = 'prefetched SMEM operand 0']
  %s0 = inlined_call_operand.vmem [shape: s32[16], index: 0, kind: input, shape index: {}]
  %s1 = inlined_call_operand.vmem [shape: f32[40,32], index: 1, kind: input, shape index: {}]
  %s2 = inlined_call_operand.hbm [shape: f32[16,32], index: 2, kind: output, shape index: {}]
  %s3 = sld [smem:[#allocation0]]
  $region14: #{tpu_custom_call.1} parent=0
    _
  %s5 = ssub.s32 1, %s3
  %s6 = scalar_select 0, %s5, %s3
  %s7 = sshll.u32 %s0, 4
  %s8 = int_to_ptr.vmem [resolvable:$true] %s7
  %10 = dma.vmem_to_smem %s8, 16, [#allocation3], [#allocation2]
  %11 = dma.done [#allocation2], 16
  %12 = sfence
  $region1: #{tpu_custom_call.1} parent=0
    #allocation4 [shape = 'u8[8192]{0}', space=vmem, size = 0x2000, scoped, tag = 'output window, operand 0, single buffered']
    #allocation5 [shape = 's32[1]{0}', space=sflag, size = 0x4, scoped, tag = 'scoped memory for tpu_custom_call.1']
    %13 = vsyncpa [#allocation5], 0
    // Predicated region
    $region2: #{tpu_custom_call.1} parent=1 // pred_check
      _
    $region3: #{tpu_custom_call.1} parent=1 // pred_check_branch
      %15 = sbr.rel (0) target = $region5
    $region4: #{tpu_custom_call.1} parent=1 // pred_region
      _
    $region5: #{tpu_custom_call.1} parent=1 // pred_fallthru
      _
    %s16 = smul.u32 0, 16
    %s17 = sld [smem:[#allocation3 + %s16]]
    %s18 = scalar_lea.vmem %s1, %s17
    %v19 = vld [vmem:[%s18] sm:$0x1]
    %vm20 = vcmask 253952
    %21 = vst.msk [vmem:[#allocation4] sm:$0x1] %vm20, %v19
    %s22 = sadd.s32 %s16, 1
    %s23 = sld [smem:[#allocation3 + %s22]]
    %s24 = scalar_lea.vmem %s1, %s23
    %v25 = vld [vmem:[%s24] sm:$0x1]
    %26 = vst.msk [vmem:[#allocation4 + $0x1] sm:$0x1] %vm20, %v25
    %s27 = sadd.s32 %s16, 2
    %s28 = sld [smem:[#allocation3 + %s27]]
    %s29 = scalar_lea.vmem %s1, %s28
    %v30 = vld [vmem:[%s29] sm:$0x1]
    %31 = vst.msk [vmem:[#allocation4 + $0x2] sm:$0x1] %vm20, %v30
    %s32 = sadd.s32 %s16, 3
    %s33 = sld [smem:[#allocation3 + %s32]]
    %s34 = scalar_lea.vmem %s1, %s33
    %v35 = vld [vmem:[%s34] sm:$0x1]
    %36 = vst.msk [vmem:[#allocation4 + $0x3] sm:$0x1] %vm20, %v35
    %s37 = sadd.s32 %s16, 4
    %s38 = sld [smem:[#allocation3 + %s37]]
    %s39 = scalar_lea.vmem %s1, %s38
    %v40 = vld [vmem:[%s39] sm:$0x1]
    %41 = vst.msk [vmem:[#allocation4 + $0x4] sm:$0x1] %vm20, %v40
    %s42 = sadd.s32 %s16, 5
    %s43 = sld [smem:[#allocation3 + %s42]]
    %s44 = scalar_lea.vmem %s1, %s43
    %v45 = vld [vmem:[%s44] sm:$0x1]
    %46 = vst.msk [vmem:[#allocation4 + $0x5] sm:$0x1] %vm20, %v45
    %s47 = sadd.s32 %s16, 6
    %s48 = sld [smem:[#allocation3 + %s47]]
    %s49 = scalar_lea.vmem %s1, %s48
    %v50 = vld [vmem:[%s49] sm:$0x1]
    %51 = vst.msk [vmem:[#allocation4 + $0x6] sm:$0x1] %vm20, %v50
    %s52 = sadd.s32 %s16, 7
    %s53 = sld [smem:[#allocation3 + %s52]]
    %s54 = scalar_lea.vmem %s1, %s53
    %v55 = vld [vmem:[%s54] sm:$0x1]
    %56 = vst.msk [vmem:[#allocation4 + $0x7] sm:$0x1] %vm20, %v55
    %s57 = sadd.s32 %s16, 8
    %s58 = sld [smem:[#allocation3 + %s57]]
    %s59 = scalar_lea.vmem %s1, %s58
    %v60 = vld [vmem:[%s59] sm:$0x1]
    %61 = vst.msk [vmem:[#allocation4 + $0x8] sm:$0x1] %vm20, %v60
    %s62 = sadd.s32 %s16, 9
    %s63 = sld [smem:[#allocation3 + %s62]]
    %s64 = scalar_lea.vmem %s1, %s63
    %v65 = vld [vmem:[%s64] sm:$0x1]
    %66 = vst.msk [vmem:[#allocation4 + $0x9] sm:$0x1] %vm20, %v65
    %s67 = sadd.s32 %s16, 10
    %s68 = sld [smem:[#allocation3 + %s67]]
    %s69 = scalar_lea.vmem %s1, %s68
    %v70 = vld [vmem:[%s69] sm:$0x1]
    %71 = vst.msk [vmem:[#allocation4 + $0xa] sm:$0x1] %vm20, %v70
    %s72 = sadd.s32 %s16, 11
    %s73 = sld [smem:[#allocation3 + %s72]]
    %s74 = scalar_lea.vmem %s1, %s73
    %v75 = vld [vmem:[%s74] sm:$0x1]
    %76 = vst.msk [vmem:[#allocation4 + $0xb] sm:$0x1] %vm20, %v75
    %s77 = sadd.s32 %s16, 12
    %s78 = sld [smem:[#allocation3 + %s77]]
    %s79 = scalar_lea.vmem %s1, %s78
    %v80 = vld [vmem:[%s79] sm:$0x1]
    %81 = vst.msk [vmem:[#allocation4 + $0xc] sm:$0x1] %vm20, %v80
    %s82 = sadd.s32 %s16, 13
    %s83 = sld [smem:[#allocation3 + %s82]]
    %s84 = scalar_lea.vmem %s1, %s83
    %v85 = vld [vmem:[%s84] sm:$0x1]
    %86 = vst.msk [vmem:[#allocation4 + $0xd] sm:$0x1] %vm20, %v85
    %s87 = sadd.s32 %s16, 14
    %s88 = sld [smem:[#allocation3 + %s87]]
    %s89 = scalar_lea.vmem %s1, %s88
    %v90 = vld [vmem:[%s89] sm:$0x1]
    %91 = vst.msk [vmem:[#allocation4 + $0xe] sm:$0x1] %vm20, %v90
    %s92 = sadd.s32 %s16, 15
    %s93 = sld [smem:[#allocation3 + %s92]]
    %s94 = scalar_lea.vmem %s1, %s93
    %v95 = vld [vmem:[%s94] sm:$0x1]
    %96 = vst.msk [vmem:[#allocation4 + $0xf] sm:$0x1] %vm20, %v95
    // Predicated region
    $region6: #{tpu_custom_call.1} parent=1 // pred_check
      _
    $region7: #{tpu_custom_call.1} parent=1 // pred_check_branch
      %98 = sbr.rel (0) target = $region9
    $region8: #{tpu_custom_call.1} parent=1 // pred_region
      %s100 = ssub.s32 256, 256
      %101 = vsyncadd [#allocation5], %s100
      %s102 = sshll.u32 [#allocation4], 4
      %s103 = int_to_ptr.vmem [resolvable:$true] %s102
      %108 = dma.vmem_to_hbm [thread:$0]  %s103, 256, %s2, [#allocation5], 128, 128, 8
    $region9: #{tpu_custom_call.1} parent=1 // pred_fallthru
      _
    // Predicated region
    $region10: #{tpu_custom_call.1} parent=1 // pred_check
      _
    $region11: #{tpu_custom_call.1} parent=1 // pred_check_branch
      %110 = sbr.rel (0) target = $region13
    $region12: #{tpu_custom_call.1} parent=1 // pred_region
      %111 = dma.done [#allocation5], 256
    $region13: #{tpu_custom_call.1} parent=1 // pred_fallthru
      _
    %112 = vsyncpa [#allocation5], 1

</llo_original>
